<compile_context>
chip_gen: v6e
topology: v6e:2x2x1
jax: 0.10.0
libtpu: 0.0.40
codegen_flags: <defaults>
</compile_context>

<pallas_src>
import functools

import jax
import jax.numpy as jnp
from jax import lax
from jax.experimental import pallas as pl
from jax.experimental.pallas import tpu as pltpu


NEG_INF_FILL = -1.0e9                 # matches torch masked_fill value
LOG2E = 1.4426950408889634            # log2(e)


def _flash_attn_kernel(q_ref, k_ref, v_ref, bias_ref, o_ref,
                       m_sc, l_sc, acc_sc, *, scale_log2, block_k):
    kk = pl.program_id(2)

    # --- init running stats at the first K tile -----------------------------
    @pl.when(kk == 0)
    def _():
        m_sc[...] = jnp.full_like(m_sc, -jnp.inf)
        l_sc[...] = jnp.zeros_like(l_sc)
        acc_sc[...] = jnp.zeros_like(acc_sc)

    q = q_ref[0]        # (TQ, Dp)
    k = k_ref[0]        # (TK, Dp)
    v = v_ref[0]        # (TK, Dvp)

    # Bias row is resident for the whole batch element; slice the current K
    # tile (aligned, block_k is a multiple of 128).  Already in log2 domain.
    start = pl.multiple_of(kk * block_k, 128)
    bias = bias_ref[0, :, pl.ds(start, block_k)]        # (1, TK)

    # scores (log2 domain) = (Q @ K^T) * scale * LOG2E + bias*LOG2E,
    # contraction expressed directly on D (no transposed copy of K).
    s = lax.dot_general(q, k, (((1,), (1,)), ((), ())),
                        preferred_element_type=jnp.float32)
    s = s * scale_log2 + bias                            # (TQ, TK) f32

    # --- online softmax update (exp2 domain) ---------------------------------
    m_prev = m_sc[...]                                   # (TQ, 128) lane-dense
    l_prev = l_sc[...]                                   # (TQ, 128)
    row_max = jnp.max(s, axis=-1, keepdims=True)         # (TQ, 1)
    m_next = jnp.maximum(m_prev, row_max)                # (TQ, 128)
    alpha = jnp.exp2(m_prev - m_next)                    # rescale factor
    p = jnp.exp2(s - m_next[:, :1])                      # (TQ, TK)

    l_sc[...] = alpha * l_prev + jnp.sum(p, axis=-1, keepdims=True)
    acc_sc[...] = alpha[:, :1] * acc_sc[...] + lax.dot_general(
        p.astype(v.dtype), v, (((1,), (0,)), ((), ())),
        preferred_element_type=jnp.float32)
    m_sc[...] = m_next

    # --- finalize on the last K tile -----------------------------------------
    @pl.when(kk == pl.num_programs(2) - 1)
    def _():
        inv_l = pl.reciprocal(l_sc[...][:, :1], approx=True)   # EUP vrcp, ~free
        o_ref[0] = (acc_sc[...] * inv_l).astype(o_ref.dtype)


def _round_up(x, m):
    return -(-x // m) * m


def _default_vmem_limit():
    try:
        cap = pltpu.get_tpu_info().vmem_capacity_bytes
    except Exception:
        cap = 128 * 1024 * 1024
    # ~3/4 of physical, capped at 96 MiB (v5e/v6e: 96 MiB, v7x: 48 MiB)
    return min(96 * 1024 * 1024, (cap * 3) // 4)


def _fit_block_k(block_q, block_k, d_p, dv_p, itemsize, vmem_limit):
    """Shrink block_k (never block_q / Dv lane density) until the
    double-buffered tiles plus f32 scratch fit the VMEM budget."""
    while block_k > 128:
        q_bytes = 2 * block_q * d_p * itemsize
        k_bytes = 2 * block_k * d_p * itemsize
        v_bytes = 2 * block_k * dv_p * itemsize
        o_bytes = 2 * block_q * dv_p * itemsize
        scratch = block_q * (dv_p + 256) * 4
        if q_bytes + k_bytes + v_bytes + o_bytes + scratch <= (vmem_limit * 4) // 5:
            break
        block_k = max(128, ((block_k // 2) // 128) * 128)
    return block_k


def dot_product_attention(Q, K, V, d, pad_index, *,
                          block_q=256, block_k=256, compute_dtype=None,
                          interpret=False):
    """Pallas equivalent of PyTorch Dot_Product_Attention.forward.

    For bf16-capable MXUs (v6e/v7x), pass compute_dtype=jnp.bfloat16 to feed
    the 2x256x256 bf16 MXU; accumulation stays f32, output dtype follows Q.
    """
    B, Sq, D = Q.shape
    _, Sk, Dv = V.shape
    scale_log2 = (1.0 / float(d) ** 0.5) * LOG2E

    # ---- feature dims padded to lane-dense multiples of 128 -----------------
    D_p = _round_up(D, 128)
    Dv_p = _round_up(Dv, 128)

    # ---- cap tiles to the real problem size (short-sequence efficiency) -----
    block_q = min(block_q, _round_up(Sq, 8))
    block_k = min(block_k, _round_up(Sk, 128))

    # ---- VMEM budget (per-generation) and block_k fitting --------------------
    vmem_limit = _default_vmem_limit()
    itemsize = jnp.dtype(compute_dtype or Q.dtype).itemsize
    block_k = _fit_block_k(block_q, block_k, D_p, Dv_p, itemsize, vmem_limit)

    Sq_p = _round_up(Sq, block_q)
    Sk_p = _round_up(Sk, block_k)

    Qp = jnp.pad(Q, ((0, 0), (0, Sq_p - Sq), (0, D_p - D)))
    Kp = jnp.pad(K, ((0, 0), (0, Sk_p - Sk), (0, D_p - D)))
    Vp = jnp.pad(V, ((0, 0), (0, Sk_p - Sk), (0, Dv_p - Dv)))
    if compute_dtype is not None:
        Qp = Qp.astype(compute_dtype)
        Kp = Kp.astype(compute_dtype)
        Vp = Vp.astype(compute_dtype)

    # Additive mask in the log2 domain: 0 for real keys, -1e9*log2(e) for
    # user-padded keys; wrapper-introduced key padding also masked so it never
    # contributes to the softmax.
    neg_fill = jnp.float32(NEG_INF_FILL * LOG2E)
    bias = jnp.where(pad_index == 1, neg_fill, jnp.float32(0.0))
    bias = jnp.pad(bias, ((0, 0), (0, 0), (0, Sk_p - Sk)),
                   constant_values=NEG_INF_FILL * LOG2E)    # (B, 1, Sk_p) f32

    grid = (B, Sq_p // block_q, Sk_p // block_k)
    kernel = functools.partial(_flash_attn_kernel,
                               scale_log2=scale_log2, block_k=block_k)

    grid_spec = pltpu.PrefetchScalarGridSpec(
        num_scalar_prefetch=0,
        grid=grid,
        in_specs=[
            pl.BlockSpec((1, block_q, D_p), lambda b, qi, kk: (b, qi, 0)),
            pl.BlockSpec((1, block_k, D_p), lambda b, qi, kk: (b, kk, 0)),
            pl.BlockSpec((1, block_k, Dv_p), lambda b, qi, kk: (b, kk, 0)),
            # Bias row resident per batch element: DMA'd once per b, sliced
            # in-kernel along kk (no per-step tiny DMAs).
            pl.BlockSpec((1, 1, Sk_p), lambda b, qi, kk: (b, 0, 0)),
        ],
        out_specs=pl.BlockSpec((1, block_q, Dv_p), lambda b, qi, kk: (b, qi, 0)),
        scratch_shapes=[
            pltpu.VMEM((block_q, 128), jnp.float32),     # running max m (lane-dense)
            pltpu.VMEM((block_q, 128), jnp.float32),     # running sum l (lane-dense)
            pltpu.VMEM((block_q, Dv_p), jnp.float32),    # output accumulator
        ],
    )

    out_padded = pl.pallas_call(
        kernel,
        out_shape=jax.ShapeDtypeStruct((B, Sq_p, Dv_p), Q.dtype),
        grid_spec=grid_spec,
        compiler_params=pltpu.CompilerParams(
            dimension_semantics=("parallel", "parallel", "arbitrary"),
            vmem_limit_bytes=int(vmem_limit),
        ),
        interpret=interpret,
    )(Qp, Kp, Vp, bias)

    # Strip wrapper-side padding.
    return out_padded[:, :Sq, :Dv]


def _reference(Q, K, V, d, pad_index):
    scores = jnp.einsum("bqd,bkd->bqk", Q, K) / jnp.sqrt(jnp.float32(d))
    scores = jnp.where(pad_index == 1, NEG_INF_FILL, scores)
    probs = jax.nn.softmax(scores, axis=-1)
    return jnp.einsum("bqk,bkv->bqv", probs, V)


if __name__ == "__main__":
    B, Sq, Sk, D, Dv = 2, 8, 8, 32, 32
    d = D

    key = jax.random.PRNGKey(0)
    kq, kk_, kv = jax.random.split(key, 3)
    Q = jax.random.normal(kq, (B, Sq, D), dtype=jnp.float32)
    K = jax.random.normal(kk_, (B, Sk, D), dtype=jnp.float32)
    V = jax.random.normal(kv, (B, Sk, Dv), dtype=jnp.float32)
    # pad mask: 1 marks padded key positions (last 2 keys of batch 1 padded)
    pad_index = jnp.zeros((B, 1, Sk), dtype=jnp.int32)
    pad_index = pad_index.at[1, 0, Sk - 2:].set(1)

    out = dot_product_attention(Q, K, V, d, pad_index)
    out = jax.block_until_ready(out)

    ref = _reference(Q, K, V, d, pad_index)
    assert out.shape == (B, Sq, Dv)
    # approx reciprocal (EUP vrcp) gives ~2^-12 relative error; allow for it.
    assert jnp.allclose(out, ref, atol=2e-3, rtol=2e-3), "mismatch vs reference"

    print("KERNEL_OK")
</pallas_src>

<mosaic_0001>
module attributes {stable_mosaic.version = 11 : i64} {
  func.func @_flash_attn_kernel(%arg0: i32, %arg1: i32, %arg2: i32, %arg3: memref<1x8x128xf32, #tpu.memory_space<vmem>>, %arg4: memref<1x128x128xf32, #tpu.memory_space<vmem>>, %arg5: memref<1x128x128xf32, #tpu.memory_space<vmem>>, %arg6: memref<1x1x128xf32, #tpu.memory_space<vmem>>, %arg7: memref<1x8x128xf32, #tpu.memory_space<vmem>>, %arg8: memref<8x128xf32, #tpu.memory_space<vmem>>, %arg9: memref<8x128xf32, #tpu.memory_space<vmem>>, %arg10: memref<8x128xf32, #tpu.memory_space<vmem>>) attributes {dimension_semantics = [#tpu.dimension_semantics<parallel>, #tpu.dimension_semantics<parallel>, #tpu.dimension_semantics<arbitrary>], iteration_bounds = array<i64: 2, 1, 1>, scalar_prefetch = 0 : i64, scratch_operands = 3 : i64, tpu.core_type = #tpu.core_type<tc>, window_params = [{transform_indices = @transform_0, window_bounds = array<i64: 1, 8, 128>}, {transform_indices = @transform_1, window_bounds = array<i64: 1, 128, 128>}, {transform_indices = @transform_2, window_bounds = array<i64: 1, 128, 128>}, {transform_indices = @transform_3, window_bounds = array<i64: 1, 1, 128>}, {transform_indices = @transform_4, window_bounds = array<i64: 1, 8, 128>}]} {
    %c0_i32 = arith.constant 0 : i32
    %0 = arith.cmpi eq, %arg2, %c0_i32 : i32
    %1 = arith.extui %0 : i1 to i32
    %c0_i32_0 = arith.constant 0 : i32
    %2 = arith.cmpi ne, %1, %c0_i32_0 : i32
    scf.if %2 {
      %cst_29 = arith.constant 0xFF800000 : f32
      %48 = vector.broadcast %cst_29 : f32 to vector<8x128xf32>
      %c0_30 = arith.constant 0 : index
      %c0_31 = arith.constant 0 : index
      %49 = vector.load %arg8[%c0_30, %c0_31] : memref<8x128xf32, #tpu.memory_space<vmem>>, vector<8x128xf32>
      tpu.vector_store %arg8[%c0_30, %c0_31], %48 {strides = array<i32>} : memref<8x128xf32, #tpu.memory_space<vmem>>, vector<8x128xf32>,
      %cst_32 = arith.constant 0.000000e+00 : f32
      %50 = vector.broadcast %cst_32 : f32 to vector<8x128xf32>
      %c0_33 = arith.constant 0 : index
      %c0_34 = arith.constant 0 : index
      %51 = vector.load %arg9[%c0_33, %c0_34] : memref<8x128xf32, #tpu.memory_space<vmem>>, vector<8x128xf32>
      tpu.vector_store %arg9[%c0_33, %c0_34], %50 {strides = array<i32>} : memref<8x128xf32, #tpu.memory_space<vmem>>, vector<8x128xf32>,
      %cst_35 = arith.constant 0.000000e+00 : f32
      %52 = vector.broadcast %cst_35 : f32 to vector<8x128xf32>
      %c0_36 = arith.constant 0 : index
      %c0_37 = arith.constant 0 : index
      %53 = vector.load %arg10[%c0_36, %c0_37] : memref<8x128xf32, #tpu.memory_space<vmem>>, vector<8x128xf32>
      tpu.vector_store %arg10[%c0_36, %c0_37], %52 {strides = array<i32>} : memref<8x128xf32, #tpu.memory_space<vmem>>, vector<8x128xf32>,
    } else {
    }
    %c0 = arith.constant 0 : index
    %c0_1 = arith.constant 0 : index
    %c0_2 = arith.constant 0 : index
    %3 = vector.load %arg3[%c0, %c0_1, %c0_2] : memref<1x8x128xf32, #tpu.memory_space<vmem>>, vector<1x8x128xf32>
    %4 = vector.shape_cast %3 : vector<1x8x128xf32> to vector<8x128xf32>
    %c0_3 = arith.constant 0 : index
    %c0_4 = arith.constant 0 : index
    %c0_5 = arith.constant 0 : index
    %5 = vector.load %arg4[%c0_3, %c0_4, %c0_5] : memref<1x128x128xf32, #tpu.memory_space<vmem>>, vector<1x128x128xf32>
    %6 = vector.shape_cast %5 : vector<1x128x128xf32> to vector<128x128xf32>
    %c0_6 = arith.constant 0 : index
    %c0_7 = arith.constant 0 : index
    %c0_8 = arith.constant 0 : index
    %7 = vector.load %arg5[%c0_6, %c0_7, %c0_8] : memref<1x128x128xf32, #tpu.memory_space<vmem>>, vector<1x128x128xf32>
    %8 = vector.shape_cast %7 : vector<1x128x128xf32> to vector<128x128xf32>
    %c128_i32 = arith.constant 128 : i32
    %9 = arith.muli %arg2, %c128_i32 : i32
    %10 = tpu.assume_multiple %9, 128 : i32
    %c0_9 = arith.constant 0 : index
    %c0_10 = arith.constant 0 : index
    %11 = arith.index_cast %10 : i32 to index
    %12 = vector.load %arg6[%c0_9, %c0_10, %11] : memref<1x1x128xf32, #tpu.memory_space<vmem>>, vector<1x1x128xf32>
    %13 = vector.shape_cast %12 : vector<1x1x128xf32> to vector<1x128xf32>
    %cst = arith.constant dense<0.000000e+00> : vector<8x128xf32>
    %14 = tpu.matmul %4, %6, %cst {dimension_numbers = #tpu.dot_dimension_numbers<[1], [1], [0], [0], [0, 0, 1, 0], [], []>} : vector<8x128xf32>, vector<128x128xf32>, vector<8x128xf32> -> vector<8x128xf32>
    %cst_11 = arith.constant 0.255034864 : f32
    %15 = vector.broadcast %cst_11 : f32 to vector<8x128xf32>
    %16 = arith.mulf %14, %15 : vector<8x128xf32>
    %17 = vector.broadcast %13 : vector<1x128xf32> to vector<8x128xf32>
    %18 = arith.addf %16, %17 : vector<8x128xf32>
    %c0_12 = arith.constant 0 : index
    %c0_13 = arith.constant 0 : index
    %19 = vector.load %arg8[%c0_12, %c0_13] : memref<8x128xf32, #tpu.memory_space<vmem>>, vector<8x128xf32>
    %c0_14 = arith.constant 0 : index
    %c0_15 = arith.constant 0 : index
    %20 = vector.load %arg9[%c0_14, %c0_15] : memref<8x128xf32, #tpu.memory_space<vmem>>, vector<8x128xf32>
    %cst_16 = arith.constant dense<0xFF800000> : vector<8xf32>
    %21 = vector.multi_reduction <maximumf>, %18, %cst_16 [1] : vector<8x128xf32> to vector<8xf32>
    %22 = vector.shape_cast %21 : vector<8xf32> to vector<8x1xf32>
    %23 = vector.broadcast %22 : vector<8x1xf32> to vector<8x128xf32>
    %24 = arith.maximumf %19, %23 : vector<8x128xf32>
    %25 = arith.subf %19, %24 : vector<8x128xf32>
    %26 = math.exp2 %25 : vector<8x128xf32>
    %27 = vector.extract_strided_slice %24 {offsets = [0, 0], sizes = [8, 1], strides = [1, 1]} : vector<8x128xf32> to vector<8x1xf32>
    %28 = vector.broadcast %27 : vector<8x1xf32> to vector<8x128xf32>
    %29 = arith.subf %18, %28 : vector<8x128xf32>
    %30 = math.exp2 %29 : vector<8x128xf32>
    %31 = arith.mulf %26, %20 : vector<8x128xf32>
    %cst_17 = arith.constant dense<0.000000e+00> : vector<8xf32>
    %32 = vector.multi_reduction <add>, %30, %cst_17 [1] : vector<8x128xf32> to vector<8xf32>
    %33 = vector.shape_cast %32 : vector<8xf32> to vector<8x1xf32>
    %34 = vector.broadcast %33 : vector<8x1xf32> to vector<8x128xf32>
    %35 = arith.addf %31, %34 : vector<8x128xf32>
    %c0_18 = arith.constant 0 : index
    %c0_19 = arith.constant 0 : index
    %36 = vector.load %arg9[%c0_18, %c0_19] : memref<8x128xf32, #tpu.memory_space<vmem>>, vector<8x128xf32>
    tpu.vector_store %arg9[%c0_18, %c0_19], %35 {strides = array<i32>} : memref<8x128xf32, #tpu.memory_space<vmem>>, vector<8x128xf32>,
    %37 = vector.extract_strided_slice %26 {offsets = [0, 0], sizes = [8, 1], strides = [1, 1]} : vector<8x128xf32> to vector<8x1xf32>
    %c0_20 = arith.constant 0 : index
    %c0_21 = arith.constant 0 : index
    %38 = vector.load %arg10[%c0_20, %c0_21] : memref<8x128xf32, #tpu.memory_space<vmem>>, vector<8x128xf32>
    %39 = vector.broadcast %37 : vector<8x1xf32> to vector<8x128xf32>
    %40 = arith.mulf %39, %38 : vector<8x128xf32>
    %cst_22 = arith.constant dense<0.000000e+00> : vector<8x128xf32>
    %41 = tpu.matmul %30, %8, %cst_22 {dimension_numbers = #tpu.dot_dimension_numbers<[1], [0], [0], [1], [0, 0, 1, 1], [], []>} : vector<8x128xf32>, vector<128x128xf32>, vector<8x128xf32> -> vector<8x128xf32>
    %42 = arith.addf %40, %41 : vector<8x128xf32>
    %c0_23 = arith.constant 0 : index
    %c0_24 = arith.constant 0 : index
    %43 = vector.load %arg10[%c0_23, %c0_24] : memref<8x128xf32, #tpu.memory_space<vmem>>, vector<8x128xf32>
    tpu.vector_store %arg10[%c0_23, %c0_24], %42 {strides = array<i32>} : memref<8x128xf32, #tpu.memory_space<vmem>>, vector<8x128xf32>,
    %c0_25 = arith.constant 0 : index
    %c0_26 = arith.constant 0 : index
    %44 = vector.load %arg8[%c0_25, %c0_26] : memref<8x128xf32, #tpu.memory_space<vmem>>, vector<8x128xf32>
    tpu.vector_store %arg8[%c0_25, %c0_26], %24 {strides = array<i32>} : memref<8x128xf32, #tpu.memory_space<vmem>>, vector<8x128xf32>,
    %c0_i32_27 = arith.constant 0 : i32
    %45 = arith.cmpi eq, %arg2, %c0_i32_27 : i32
    %46 = arith.extui %45 : i1 to i32
    %c0_i32_28 = arith.constant 0 : i32
    %47 = arith.cmpi ne, %46, %c0_i32_28 : i32
    scf.if %47 {
      %c0_29 = arith.constant 0 : index
      %c0_30 = arith.constant 0 : index
      %48 = vector.load %arg9[%c0_29, %c0_30] : memref<8x128xf32, #tpu.memory_space<vmem>>, vector<8x128xf32>
      %49 = vector.extract_strided_slice %48 {offsets = [0, 0], sizes = [8, 1], strides = [1, 1]} : vector<8x128xf32> to vector<8x1xf32>
      %50 = tpu.reciprocal %49 {approx = true} : vector<8x1xf32> -> vector<8x1xf32>
      %c0_31 = arith.constant 0 : index
      %c0_32 = arith.constant 0 : index
      %51 = vector.load %arg10[%c0_31, %c0_32] : memref<8x128xf32, #tpu.memory_space<vmem>>, vector<8x128xf32>
      %52 = vector.broadcast %50 : vector<8x1xf32> to vector<8x128xf32>
      %53 = arith.mulf %51, %52 : vector<8x128xf32>
      %c0_33 = arith.constant 0 : index
      %c0_34 = arith.constant 0 : index
      %c0_35 = arith.constant 0 : index
      %54 = vector.load %arg7[%c0_33, %c0_34, %c0_35] : memref<1x8x128xf32, #tpu.memory_space<vmem>>, vector<1x8x128xf32>
      %55 = vector.shape_cast %54 : vector<1x8x128xf32> to vector<8x128xf32>
      %56 = vector.shape_cast %53 : vector<8x128xf32> to vector<1x8x128xf32>
      tpu.vector_store %arg7[%c0_33, %c0_34, %c0_35], %56 {strides = array<i32>} : memref<1x8x128xf32, #tpu.memory_space<vmem>>, vector<1x8x128xf32>,
    } else {
    }
    return
  }
  func.func @transform_0(%arg0: i32, %arg1: i32, %arg2: i32) -> (i32, i32, i32) {
    %c0_i32 = arith.constant 0 : i32
    %c0_i32_0 = arith.constant 0 : i32
    return %arg0, %arg1, %c0_i32 : i32, i32, i32
  }
  func.func @transform_1(%arg0: i32, %arg1: i32, %arg2: i32) -> (i32, i32, i32) {
    %c0_i32 = arith.constant 0 : i32
    %c0_i32_0 = arith.constant 0 : i32
    return %arg0, %arg2, %c0_i32 : i32, i32, i32
  }
  func.func @transform_2(%arg0: i32, %arg1: i32, %arg2: i32) -> (i32, i32, i32) {
    %c0_i32 = arith.constant 0 : i32
    %c0_i32_0 = arith.constant 0 : i32
    return %arg0, %arg2, %c0_i32 : i32, i32, i32
  }
  func.func @transform_3(%arg0: i32, %arg1: i32, %arg2: i32) -> (i32, i32, i32) {
    %c0_i32 = arith.constant 0 : i32
    %c0_i32_0 = arith.constant 0 : i32
    %c0_i32_1 = arith.constant 0 : i32
    return %arg0, %c0_i32, %c0_i32_0 : i32, i32, i32
  }
  func.func @transform_4(%arg0: i32, %arg1: i32, %arg2: i32) -> (i32, i32, i32) {
    %c0_i32 = arith.constant 0 : i32
    %c0_i32_0 = arith.constant 0 : i32
    return %arg0, %arg1, %c0_i32 : i32, i32, i32
  }
}

</mosaic_0001>

<llo_original>
// kernel: tpu_custom_call.1
$region0: #{tpu_custom_call.1}
  #allocation0 [shape = 'u32[]', space=smem, size = 0x4, offset = 0x4, fixed_abs, tag = 'smem constant byte address 0x4 - core index']
  #allocation1 [shape = 'u32[144,128]{1,0:T(1,128)}', space=vmem, size = 0x12000, scoped, tag = 'internal scratch']
  #allocation2 [shape = 'f32[8,128]{1,0:T(8,128)}', space=vmem, size = 0x1000, scoped, tag = 'scratch operand']
  #allocation3 [shape = 'f32[8,128]{1,0:T(8,128)}', space=vmem, size = 0x1000, scoped, tag = 'scratch operand']
  #allocation4 [shape = 'f32[8,128]{1,0:T(8,128)}', space=vmem, size = 0x1000, scoped, tag = 'scratch operand']
  %s0 = inlined_call_operand.hbm [shape: f32[2,8,128], index: 0, kind: input, shape index: {}]
  %s1 = inlined_call_operand.hbm [shape: f32[2,128,128], index: 1, kind: input, shape index: {}]
  %s2 = inlined_call_operand.hbm [shape: f32[2,128,128], index: 2, kind: input, shape index: {}]
  %s3 = inlined_call_operand.vmem [shape: f32[2,1,128], index: 3, kind: input, shape index: {}]
  %s4 = inlined_call_operand.hbm [shape: f32[2,8,128], index: 4, kind: output, shape index: {}]
  %s5 = sld [smem:[#allocation0]]
  $region69: #{tpu_custom_call.1} parent=0
    _
  %s7 = ssub.s32 1, %s5
  %s8 = scalar_select 0, %s7, %s5
  $region1: #{tpu_custom_call.1} parent=0
    #allocation5 [shape = 'u8[8192]{0}', space=vmem, size = 0x2000, scoped, tag = 'input window, operand 0']
    #allocation6 [shape = 's32[2]{0}', space=sflag, size = 0x8, scoped, tag = 'scoped memory for tpu_custom_call.1']
    #allocation7 [shape = 's32[2]{0}', space=sflag, size = 0x8, scoped, tag = 'scoped memory for tpu_custom_call.1']
    #allocation8 [shape = 'u8[131072]{0}', space=vmem, size = 0x20000, scoped, tag = 'input window, operand 1']
    #allocation9 [shape = 's32[2]{0}', space=sflag, size = 0x8, scoped, tag = 'scoped memory for tpu_custom_call.1']
    #allocation10 [shape = 'u8[131072]{0}', space=vmem, size = 0x20000, scoped, tag = 'input window, operand 2']
    #allocation11 [shape = 'u8[8192]{0}', space=vmem, size = 0x2000, scoped, tag = 'output window, operand 0']
    %9 = vsyncpa [#allocation6], 0
    %s10 = scalar_lea.sflag [#allocation6], 1
    %11 = vsyncpa %s10, 0
    %12 = vsyncpa [#allocation9], 0
    %s13 = scalar_lea.sflag [#allocation9], 1
    %14 = vsyncpa %s13, 0
    %15 = vsyncpa [#allocation7], 0
    %s16 = scalar_lea.sflag [#allocation7], 1
    %17 = vsyncpa %s16, 0
    loop: start=0, step=1, limit=4
    $region2: #{tpu_custom_call.1} parent=1 // loop_pre_header
      _
    $region3: #{tpu_custom_call.1} parent=1 // loop_header
      %s19 = sphi 0, %s23
      %p20 = scmp.ge.s32.totalorder %s19, 4
      %s26 = sphi 0, %s45
      %s27 = sphi 0, %s41
      %s28 = sphi 0, %s37
      %s29 = sphi 0, %s26
      %s30 = sphi 0, %s27
      %s31 = sphi 0, %s28
      %s32 = sphi 0, %s29
      %s33 = sphi 0, %s30
      %s34 = sphi 0, %s31
      %s50 = sphi 0, %s52
      %s53 = sphi 0, %s50
      %s54 = sphi 0, %s53
      %s70 = sphi 0, %s54
      %s78 = sphi 0, %s80
      %s81 = sphi 0, %s78
      %s82 = sphi 0, %s81
      %s98 = sphi 0, %s82
      %s106 = sphi 0, %s108
      %s109 = sphi 0, %s106
      %s110 = sphi 0, %s109
      %s126 = sphi 0, %s110
      %s132 = sphi 0, %s134
      %s135 = sphi 0, %s132
      %s136 = sphi 0, %s135
      %s152 = sphi 0, %s136
      %s160 = sphi 0, %s162
      %s163 = sphi 0, %s160
      %s164 = sphi 0, %s163
      %s180 = sphi 0, %s164
    $region4: #{tpu_custom_call.1} parent=1 // loop_header_branch
      %22 = sbr.rel (%p20) target = $region8
    $region5: #{tpu_custom_call.1} parent=1 // loop_body
      %s24 = ssub.s32 %s19, 1
      %s25 = ssub.s32 %s19, 2
      %s35 = sadd.s32 1, %s28
      %p36 = scmp.ge.s32.totalorder %s35, 1
      %s37 = scalar_select %p36, 0, %s35
      %s38 = sadd.s32 1, %s27
      %s39 = scalar_select %p36, %s38, %s27
      %p40 = scmp.ge.s32.totalorder %s39, 1
      %s41 = scalar_select %p40, 0, %s39
      %s42 = sadd.s32 1, %s26
      %s43 = scalar_select %p40, %s42, %s26
      %p44 = scmp.ge.s32.totalorder %s43, 2
      %s45 = scalar_select %p44, 0, %s43
      %s46 = ssub.s32 %s26, %s45
      %s47 = ssub.s32 %s27, %s41
      %s48 = sor.u32 %s46, %s47
      %p49 = scmp.eq.s32.totalorder %s48, 0
      %s51 = sadd.s32 %s50, 1
      %s52 = scalar_select %p49, %s50, %s51
      %p55 = pneg %p49
      %p56 = scmp.eq.s32.totalorder %s19, 1
      %p57 = por %p55, %p56
      %p58 = scmp.ne.s32.totalorder %s50, %s53
      %p59 = scmp.eq.s32.totalorder %s19, 0
      %p60 = por %p58, %p59
      %p61 = scmp.ne.s32.totalorder %s50, %s53
      %p62 = scmp.eq.s32.totalorder %s24, 1
      %p63 = por %p61, %p62
      %p64 = scmp.ne.s32.totalorder %s53, %s54
      %p65 = scmp.eq.s32.totalorder %s24, 0
      %p66 = por %p64, %p65
      %p67 = scmp.ne.s32.totalorder %s53, %s54
      %p68 = scmp.eq.s32.totalorder %s25, 1
      %p69 = por %p67, %p68
      %p71 = scmp.ne.s32.totalorder %s54, %s70
      %p72 = scmp.eq.s32.totalorder %s25, 0
      %p73 = por %p71, %p72
      %s74 = ssub.s32 %s26, %s45
      %s75 = ssub.s32 %s28, %s37
      %s76 = sor.u32 %s74, %s75
      %p77 = scmp.eq.s32.totalorder %s76, 0
      %s79 = sadd.s32 %s78, 1
      %s80 = scalar_select %p77, %s78, %s79
      %p83 = pneg %p77
      %p84 = scmp.eq.s32.totalorder %s19, 1
      %p85 = por %p83, %p84
      %p86 = scmp.ne.s32.totalorder %s78, %s81
      %p87 = scmp.eq.s32.totalorder %s19, 0
      %p88 = por %p86, %p87
      %p89 = scmp.ne.s32.totalorder %s78, %s81
      %p90 = scmp.eq.s32.totalorder %s24, 1
      %p91 = por %p89, %p90
      %p92 = scmp.ne.s32.totalorder %s81, %s82
      %p93 = scmp.eq.s32.totalorder %s24, 0
      %p94 = por %p92, %p93
      %p95 = scmp.ne.s32.totalorder %s81, %s82
      %p96 = scmp.eq.s32.totalorder %s25, 1
      %p97 = por %p95, %p96
      %p99 = scmp.ne.s32.totalorder %s82, %s98
      %p100 = scmp.eq.s32.totalorder %s25, 0
      %p101 = por %p99, %p100
      %s102 = ssub.s32 %s26, %s45
      %s103 = ssub.s32 %s28, %s37
      %s104 = sor.u32 %s102, %s103
      %p105 = scmp.eq.s32.totalorder %s104, 0
      %s107 = sadd.s32 %s106, 1
      %s108 = scalar_select %p105, %s106, %s107
      %p111 = pneg %p105
      %p112 = scmp.eq.s32.totalorder %s19, 1
      %p113 = por %p111, %p112
      %p114 = scmp.ne.s32.totalorder %s106, %s109
      %p115 = scmp.eq.s32.totalorder %s19, 0
      %p116 = por %p114, %p115
      %p117 = scmp.ne.s32.totalorder %s106, %s109
      %p118 = scmp.eq.s32.totalorder %s24, 1
      %p119 = por %p117, %p118
      %p120 = scmp.ne.s32.totalorder %s109, %s110
      %p121 = scmp.eq.s32.totalorder %s24, 0
      %p122 = por %p120, %p121
      %p123 = scmp.ne.s32.totalorder %s109, %s110
      %p124 = scmp.eq.s32.totalorder %s25, 1
      %p125 = por %p123, %p124
      %p127 = scmp.ne.s32.totalorder %s110, %s126
      %p128 = scmp.eq.s32.totalorder %s25, 0
      %p129 = por %p127, %p128
      %s130 = ssub.s32 %s26, %s45
      %p131 = scmp.eq.s32.totalorder %s130, 0
      %s133 = sadd.s32 %s132, 1
      %s134 = scalar_select %p131, %s132, %s133
      %p137 = pneg %p131
      %p138 = scmp.eq.s32.totalorder %s19, 1
      %p139 = por %p137, %p138
      %p140 = scmp.ne.s32.totalorder %s132, %s135
      %p141 = scmp.eq.s32.totalorder %s19, 0
      %p142 = por %p140, %p141
      %p143 = scmp.ne.s32.totalorder %s132, %s135
      %p144 = scmp.eq.s32.totalorder %s24, 1
      %p145 = por %p143, %p144
      %p146 = scmp.ne.s32.totalorder %s135, %s136
      %p147 = scmp.eq.s32.totalorder %s24, 0
      %p148 = por %p146, %p147
      %p149 = scmp.ne.s32.totalorder %s135, %s136
      %p150 = scmp.eq.s32.totalorder %s25, 1
      %p151 = por %p149, %p150
      %p153 = scmp.ne.s32.totalorder %s136, %s152
      %p154 = scmp.eq.s32.totalorder %s25, 0
      %p155 = por %p153, %p154
      %s156 = ssub.s32 %s26, %s45
      %s157 = ssub.s32 %s27, %s41
      %s158 = sor.u32 %s156, %s157
      %p159 = scmp.eq.s32.totalorder %s158, 0
      %s161 = sadd.s32 %s160, 1
      %s162 = scalar_select %p159, %s160, %s161
      %p165 = pneg %p159
      %p166 = scmp.eq.s32.totalorder %s19, 1
      %p167 = por %p165, %p166
      %p168 = scmp.ne.s32.totalorder %s160, %s163
      %p169 = scmp.eq.s32.totalorder %s19, 0
      %p170 = por %p168, %p169
      %p171 = scmp.ne.s32.totalorder %s160, %s163
      %p172 = scmp.eq.s32.totalorder %s24, 1
      %p173 = por %p171, %p172
      %p174 = scmp.ne.s32.totalorder %s163, %s164
      %p175 = scmp.eq.s32.totalorder %s24, 0
      %p176 = por %p174, %p175
      %p177 = scmp.ne.s32.totalorder %s163, %s164
      %p178 = scmp.eq.s32.totalorder %s25, 1
      %p179 = por %p177, %p178
      %p181 = scmp.ne.s32.totalorder %s164, %s180
      %p182 = scmp.eq.s32.totalorder %s25, 0
      %p183 = por %p181, %p182
      %p184 = scmp.le.s32.totalorder 1, %s19
      %p185 = scmp.lt.s32.totalorder %s19, 3
      %p186 = pnand %p184, %p185
      %p187 = pneg %p186
      // Predicated region
      $region9: #{tpu_custom_call.1} parent=5 // pred_check
        _
      $region10: #{tpu_custom_call.1} parent=5 // pred_check_branch
        %189 = sbr.rel (%p186) target = $region12
      $region11: #{tpu_custom_call.1} parent=5 // pred_region
        %s190 = ssub.s32 %s19, 1
      $region12: #{tpu_custom_call.1} parent=5 // pred_fallthru
        _
      %p191 = scmp.lt.s32.totalorder %s19, 2
      // Predicated region
      $region13: #{tpu_custom_call.1} parent=5 // pred_check
        %p192 = pneg %p191
      $region14: #{tpu_custom_call.1} parent=5 // pred_check_branch
        %194 = sbr.rel (%p192) target = $region16
      $region15: #{tpu_custom_call.1} parent=5 // pred_region
        // Predicated region
        $region17: #{tpu_custom_call.1} parent=15 // pred_check
          %p195 = pneg %p60
        $region18: #{tpu_custom_call.1} parent=15 // pred_check_branch
          %197 = sbr.rel (%p195) target = $region20
        $region19: #{tpu_custom_call.1} parent=15 // pred_region
          %s198 = sand.u32 %s50, 1
          %s199 = scalar_lea.sflag [#allocation6], %s198
          %s200 = sand.u32 %s50, 1
          %s201 = smul.addr %s200, 8
          %s202 = scalar_lea.vmem [#allocation5], %s201
          %s204 = ssub.s32 128, 128
          %205 = vsyncadd %s199, %s204
          %s206 = sadd.s32 %s27, %s26
          %s207 = smul.addr %s206, 128
          %s208 = scalar_lea.hbm %s0, %s207
          %s210 = sshll.u32 %s202, 4
          %s211 = int_to_ptr.vmem [resolvable:$true] %s210
          %213 = dma.hbm_to_vmem [thread:$0]  %s208, 128, %s211, %s199
        $region20: #{tpu_custom_call.1} parent=15 // pred_fallthru
          _
        // Predicated region
        $region21: #{tpu_custom_call.1} parent=15 // pred_check
          %p214 = pneg %p88
        $region22: #{tpu_custom_call.1} parent=15 // pred_check_branch
          %216 = sbr.rel (%p214) target = $region24
        $region23: #{tpu_custom_call.1} parent=15 // pred_region
          %s217 = sand.u32 %s19, 1
          %s218 = scalar_lea.sflag [#allocation9], %s217
          %s219 = sand.u32 %s78, 1
          %s220 = smul.addr %s219, 128
          %s221 = scalar_lea.vmem [#allocation8], %s220
          %s222 = smul.u32 16, %s28
          %s224 = ssub.s32 2048, 2048
          %225 = vsyncadd %s218, %s224
          %s226 = smul.addr %s26, 16
          %s227 = sadd.s32 %s222, %s226
          %s228 = smul.addr %s227, 128
          %s229 = scalar_lea.hbm %s1, %s228
          %s230 = sshll.u32 %s221, 4
          %s231 = int_to_ptr.vmem [resolvable:$true] %s230
          %236 = dma.hbm_to_vmem [thread:$0]  %s229, 2048, %s231, %s218, 128, 128, 8
        $region24: #{tpu_custom_call.1} parent=15 // pred_fallthru
          _
        // Predicated region
        $region25: #{tpu_custom_call.1} parent=15 // pred_check
          %p237 = pneg %p116
        $region26: #{tpu_custom_call.1} parent=15 // pred_check_branch
          %239 = sbr.rel (%p237) target = $region28
        $region27: #{tpu_custom_call.1} parent=15 // pred_region
          %s240 = sand.u32 %s19, 1
          %s241 = scalar_lea.sflag [#allocation9], %s240
          %s242 = sand.u32 %s106, 1
          %s243 = smul.addr %s242, 128
          %s244 = scalar_lea.vmem [#allocation10], %s243
          %s245 = smul.u32 16, %s28
          %s247 = ssub.s32 2048, 2048
          %248 = vsyncadd %s241, %s247
          %s249 = smul.addr %s26, 16
          %s250 = sadd.s32 %s245, %s249
          %s251 = smul.addr %s250, 128
          %s252 = scalar_lea.hbm %s2, %s251
          %s253 = sshll.u32 %s244, 4
          %s254 = int_to_ptr.vmem [resolvable:$true] %s253
          %259 = dma.hbm_to_vmem [thread:$0]  %s252, 2048, %s254, %s241, 128, 128, 8
        $region28: #{tpu_custom_call.1} parent=15 // pred_fallthru
          _
        // Predicated region
        $region29: #{tpu_custom_call.1} parent=15 // pred_check
          %p260 = pneg %p142
        $region30: #{tpu_custom_call.1} parent=15 // pred_check_branch
          %262 = sbr.rel (%p260) target = $region32
        $region31: #{tpu_custom_call.1} parent=15 // pred_region
          %p263 = scmp.lt.s32.totalorder %s26, 1
          %s264 = scalar_select %p263, %s26, 1
          %s265 = scalar_lea.vmem %s3, %s264
        $region32: #{tpu_custom_call.1} parent=15 // pred_fallthru
          _
      $region16: #{tpu_custom_call.1} parent=5 // pred_fallthru
        _
      %p266 = scmp.le.s32.totalorder 1, %s19
      %p267 = scmp.lt.s32.totalorder %s19, 3
      %p268 = pnand %p266, %p267
      %p269 = pneg %p268
      // Predicated region
      $region33: #{tpu_custom_call.1} parent=5 // pred_check
        _
      $region34: #{tpu_custom_call.1} parent=5 // pred_check_branch
        %271 = sbr.rel (%p268) target = $region36
      $region35: #{tpu_custom_call.1} parent=5 // pred_region
        %s272 = ssub.s32 %s19, 1
        %s273 = sand.u32 %s53, 1
        %s274 = scalar_lea.sflag [#allocation6], %s273
        %s275 = sand.u32 %s53, 1
        %s276 = smul.addr %s275, 8
        %s277 = scalar_lea.vmem [#allocation5], %s276
        // Predicated region
        $region37: #{tpu_custom_call.1} parent=35 // pred_check
          %p278 = pneg %p66
        $region38: #{tpu_custom_call.1} parent=35 // pred_check_branch
          %280 = sbr.rel (%p278) target = $region40
        $region39: #{tpu_custom_call.1} parent=35 // pred_region
          %281 = dma.done %s274, 128
        $region40: #{tpu_custom_call.1} parent=35 // pred_fallthru
          _
        %s282 = sand.u32 %s24, 1
        %s283 = scalar_lea.sflag [#allocation9], %s282
        %s284 = sand.u32 %s81, 1
        %s285 = smul.addr %s284, 128
        %s286 = scalar_lea.vmem [#allocation8], %s285
        // Predicated region
        $region41: #{tpu_custom_call.1} parent=35 // pred_check
          %p287 = pneg %p94
        $region42: #{tpu_custom_call.1} parent=35 // pred_check_branch
          %289 = sbr.rel (%p287) target = $region44
        $region43: #{tpu_custom_call.1} parent=35 // pred_region
          %290 = dma.done %s283, 2048
        $region44: #{tpu_custom_call.1} parent=35 // pred_fallthru
          _
        %s291 = sand.u32 %s24, 1
        %s292 = scalar_lea.sflag [#allocation9], %s291
        %s293 = sand.u32 %s109, 1
        %s294 = smul.addr %s293, 128
        %s295 = scalar_lea.vmem [#allocation10], %s294
        // Predicated region
        $region45: #{tpu_custom_call.1} parent=35 // pred_check
          %p296 = pneg %p122
        $region46: #{tpu_custom_call.1} parent=35 // pred_check_branch
          %298 = sbr.rel (%p296) target = $region48
        $region47: #{tpu_custom_call.1} parent=35 // pred_region
          %299 = dma.done %s292, 2048
        $region48: #{tpu_custom_call.1} parent=35 // pred_fallthru
          _
        %s300 = sand.u32 %s53, 1
        %s301 = scalar_lea.sflag [#allocation6], %s300
        %s302 = sand.u32 %s53, 1
        %s303 = smul.addr %s302, 8
        %s304 = scalar_lea.vmem [#allocation5], %s303
        %p305 = pneg %p66
        %p306 = pneg %p63
        %s307 = sand.u32 %s24, 1
        %s308 = scalar_lea.sflag [#allocation9], %s307
        %s309 = sand.u32 %s81, 1
        %s310 = smul.addr %s309, 128
        %s311 = scalar_lea.vmem [#allocation8], %s310
        %p312 = pneg %p94
        %p313 = pneg %p91
        %s314 = sand.u32 %s24, 1
        %s315 = scalar_lea.sflag [#allocation9], %s314
        %s316 = sand.u32 %s109, 1
        %s317 = smul.addr %s316, 128
        %s318 = scalar_lea.vmem [#allocation10], %s317
        %p319 = pneg %p122
        %p320 = pneg %p119
        %p321 = scmp.lt.s32.totalorder %s29, 1
        %s322 = scalar_select %p321, %s29, 1
        %s323 = scalar_lea.vmem %s3, %s322
        %p324 = pneg %p148
        %p325 = pneg %p145
        %p326 = pneg %p176
        %p327 = pneg %p173
        %s328 = sand.u32 %s163, 1
        %s329 = scalar_lea.sflag [#allocation7], %s328
        %s330 = sand.u32 %s163, 1
        %s331 = smul.addr %s330, 8
        %s332 = scalar_lea.vmem [#allocation11], %s331
        %s333 = smul.u32 16, %s31
        %s334 = smul.u32 16, %s31
        %p335 = scmp.lt.s32.totalorder %s29, 1
        %s336 = scalar_select %p335, %s29, 1
        %s337 = scalar_lea.vmem %s3, %s336
        %p338 = scmp.eq.s32.totalorder %s31, 0
        // Predicated region
        $region49: #{tpu_custom_call.1} parent=35 // pred_check
          %p339 = pneg %p338
        $region50: #{tpu_custom_call.1} parent=35 // pred_check_branch
          %341 = sbr.rel (%p339) target = $region52
        $region51: #{tpu_custom_call.1} parent=35 // pred_region
          %342 = vst [vmem:[#allocation2] sm:$0xff] -inf
          %343 = vst [vmem:[#allocation3] sm:$0xff] 0.0
          %344 = vst [vmem:[#allocation4] sm:$0xff] 0.0
        $region52: #{tpu_custom_call.1} parent=35 // pred_fallthru
          _
        %v345 = vld [vmem:[%s277] sm:$0xff]
        %v346 = vld [vmem:[%s286] sm:$0xff]
        %v347 = vld [vmem:[%s286 + $0x8] sm:$0xff]
        %v348 = vld [vmem:[%s286 + $0x10] sm:$0xff]
        %v349 = vld [vmem:[%s286 + $0x18] sm:$0xff]
        %v350 = vld [vmem:[%s286 + $0x20] sm:$0xff]
        %v351 = vld [vmem:[%s286 + $0x28] sm:$0xff]
        %v352 = vld [vmem:[%s286 + $0x30] sm:$0xff]
        %v353 = vld [vmem:[%s286 + $0x38] sm:$0xff]
        %v354 = vld [vmem:[%s286 + $0x40] sm:$0xff]
        %v355 = vld [vmem:[%s286 + $0x48] sm:$0xff]
        %v356 = vld [vmem:[%s286 + $0x50] sm:$0xff]
        %v357 = vld [vmem:[%s286 + $0x58] sm:$0xff]
        %v358 = vld [vmem:[%s286 + $0x60] sm:$0xff]
        %v359 = vld [vmem:[%s286 + $0x68] sm:$0xff]
        %v360 = vld [vmem:[%s286 + $0x70] sm:$0xff]
        %v361 = vld [vmem:[%s286 + $0x78] sm:$0xff]
        %v362 = vld [vmem:[%s295] sm:$0xff]
        %v363 = vld [vmem:[%s295 + $0x8] sm:$0xff]
        %v364 = vld [vmem:[%s295 + $0x10] sm:$0xff]
        %v365 = vld [vmem:[%s295 + $0x18] sm:$0xff]
        %v366 = vld [vmem:[%s295 + $0x20] sm:$0xff]
        %v367 = vld [vmem:[%s295 + $0x28] sm:$0xff]
        %v368 = vld [vmem:[%s295 + $0x30] sm:$0xff]
        %v369 = vld [vmem:[%s295 + $0x38] sm:$0xff]
        %v370 = vld [vmem:[%s295 + $0x40] sm:$0xff]
        %v371 = vld [vmem:[%s295 + $0x48] sm:$0xff]
        %v372 = vld [vmem:[%s295 + $0x50] sm:$0xff]
        %v373 = vld [vmem:[%s295 + $0x58] sm:$0xff]
        %v374 = vld [vmem:[%s295 + $0x60] sm:$0xff]
        %v375 = vld [vmem:[%s295 + $0x68] sm:$0xff]
        %v376 = vld [vmem:[%s295 + $0x70] sm:$0xff]
        %v377 = vld [vmem:[%s295 + $0x78] sm:$0xff]
        %s378 = smul.u32 %s31, 128
        %s379 = sshra.s32 %s378, 7
        %s380 = sand.u32 %s378, 127
        %s381 = scalar_lea.vmem %s337, %s379
        %v382 = vld [vmem:[%s381] sm:$0x1]
        %383 = vmatprep.subr.mxu0 0.0
        %384 = vmatpush1.xpose.msra.mxu0 %v361
        %385 = vmatprep.subr.mxu0 0.0
        %386 = vmatpush1.xpose.msra.mxu0 %v360
        %387 = vmatprep.subr.mxu0 0.0
        %388 = vmatpush1.xpose.msra.mxu0 %v359
        %389 = vmatprep.subr.mxu0 0.0
        %390 = vmatpush1.xpose.msra.mxu0 %v358
        %391 = vmatprep.subr.mxu0 0.0
        %392 = vmatpush1.xpose.msra.mxu0 %v357
        %393 = vmatprep.subr.mxu0 0.0
        %394 = vmatpush1.xpose.msra.mxu0 %v356
        %395 = vmatprep.subr.mxu0 0.0
        %396 = vmatpush1.xpose.msra.mxu0 %v355
        %397 = vmatprep.subr.mxu0 0.0
        %398 = vmatpush1.xpose.msra.mxu0 %v354
        %399 = vmatprep.subr.mxu0 0.0
        %400 = vmatpush1.xpose.msra.mxu0 %v353
        %401 = vmatprep.subr.mxu0 0.0
        %402 = vmatpush1.xpose.msra.mxu0 %v352
        %403 = vmatprep.subr.mxu0 0.0
        %404 = vmatpush1.xpose.msra.mxu0 %v351
        %405 = vmatprep.subr.mxu0 0.0
        %406 = vmatpush1.xpose.msra.mxu0 %v350
        %407 = vmatprep.subr.mxu0 0.0
        %408 = vmatpush1.xpose.msra.mxu0 %v349
        %409 = vmatprep.subr.mxu0 0.0
        %410 = vmatpush1.xpose.msra.mxu0 %v348
        %411 = vmatprep.subr.mxu0 0.0
        %412 = vmatpush1.xpose.msra.mxu0 %v347
        %413 = vmatprep.subr.mxu0 0.0
        %414 = vmatpush1.xpose.msra.mxu0 %v346
        %415 = vmatprep.subr.mxu0 0.0
        %416 = vmatpush2.xpose.msra.mxu0 0.0
        %417 = vmatprep.subr.mxu0 0.0
        %418 = vmatpush2.xpose.msra.mxu0 0.0
        %419 = vmatprep.subr.mxu0 0.0
        %420 = vmatpush2.xpose.msra.mxu0 0.0
        %421 = vmatprep.subr.mxu0 0.0
        %422 = vmatpush2.xpose.msra.mxu0 0.0
        %423 = vmatprep.subr.mxu0 0.0
        %424 = vmatpush2.xpose.msra.mxu0 0.0
        %425 = vmatprep.subr.mxu0 0.0
        %426 = vmatpush2.xpose.msra.mxu0 0.0
        %427 = vmatprep.subr.mxu0 0.0
        %428 = vmatpush2.xpose.msra.mxu0 0.0
        %429 = vmatprep.subr.mxu0 0.0
        %430 = vmatpush2.xpose.msra.mxu0 0.0
        %431 = vmatprep.subr.mxu0 0.0
        %432 = vmatpush2.xpose.msra.mxu0 0.0
        %433 = vmatprep.subr.mxu0 0.0
        %434 = vmatpush2.xpose.msra.mxu0 0.0
        %435 = vmatprep.subr.mxu0 0.0
        %436 = vmatpush2.xpose.msra.mxu0 0.0
        %437 = vmatprep.subr.mxu0 0.0
        %438 = vmatpush2.xpose.msra.mxu0 0.0
        %439 = vmatprep.subr.mxu0 0.0
        %440 = vmatpush2.xpose.msra.mxu0 0.0
        %441 = vmatprep.subr.mxu0 0.0
        %442 = vmatpush2.xpose.msra.mxu0 0.0
        %443 = vmatprep.subr.mxu0 0.0
        %444 = vmatpush2.xpose.msra.mxu0 0.0
        %445 = vmatprep.subr.mxu0 0.0
        %446 = vmatpush2.xpose.msra.mxu0 0.0
        %447 = vmatprep.mubr.f32.mxu0 0.0
        %448 = vmatmul.mubr.f32.gmra.mxu0 %v345
        %v449 = vpop.f32.mrf.mxu0
        %v450 = vadd.f32 0.0, %v449
        %v451 = vpop.f32.mrf.mxu0
        %452 = vdwg.mxu0
        %v453 = vmul.f32 %v450, 0.25503486
        %v455 = vlaneseq
        %v456 = vshrl.u32 %v455, 7
        %v457 = vsub.s32 0, %v456
        %v458 = vrot.slane %v382, %v457
        %v460 = vadd.f32 %v453, %v458
        %v461 = vld [vmem:[#allocation2] sm:$0xff]
        %v462 = vld [vmem:[#allocation3] sm:$0xff]
        %463 = vmax.xlane.f32.xlu0 %v460
        %v464 = vpop.xlane.xlu0 %463
        %v465 = vmax.f32 %v461, %v464
        %v466 = vsub.f32 %v461, %v465
        %v467 = vpow.pop %v466
        %469 = vset.pattern.permute.xlu0 0
        %470 = vperm.xlu0 %469, %v465
        %v471 = vpop.permute.xlu0 %470
        %v473 = vsub.f32 %v460, %v471
        %v474 = vpow.pop %v473
        %v475 = vmul.f32 %v467, %v462
        %476 = vadd.xlane.f32.xlu0 %v474
        %v477 = vpop.xlane.xlu0 %476
        %v478 = vadd.f32 %v475, %v477
        %479 = vst [vmem:[#allocation3] sm:$0xff] %v478
        %v480 = vld [vmem:[#allocation4] sm:$0xff]
        %482 = vset.pattern.permute.xlu0 0
        %483 = vperm.xlu0 %482, %v467
        %v484 = vpop.permute.xlu0 %483
        %v486 = vmul.f32 %v484, %v480
        %487 = vmatprep.subr.mxu0 0.0
        %488 = vmatpush1.msra.mxu0 %v377
        %489 = vmatprep.subr.mxu0 0.0
        %490 = vmatpush1.msra.mxu0 %v376
        %491 = vmatprep.subr.mxu0 0.0
        %492 = vmatpush1.msra.mxu0 %v375
        %493 = vmatprep.subr.mxu0 0.0
        %494 = vmatpush1.msra.mxu0 %v374
        %495 = vmatprep.subr.mxu0 0.0
        %496 = vmatpush1.msra.mxu0 %v373
        %497 = vmatprep.subr.mxu0 0.0
        %498 = vmatpush1.msra.mxu0 %v372
        %499 = vmatprep.subr.mxu0 0.0
        %500 = vmatpush1.msra.mxu0 %v371
        %501 = vmatprep.subr.mxu0 0.0
        %502 = vmatpush1.msra.mxu0 %v370
        %503 = vmatprep.subr.mxu0 0.0
        %504 = vmatpush1.msra.mxu0 %v369
        %505 = vmatprep.subr.mxu0 0.0
        %506 = vmatpush1.msra.mxu0 %v368
        %507 = vmatprep.subr.mxu0 0.0
        %508 = vmatpush1.msra.mxu0 %v367
        %509 = vmatprep.subr.mxu0 0.0
        %510 = vmatpush1.msra.mxu0 %v366
        %511 = vmatprep.subr.mxu0 0.0
        %512 = vmatpush1.msra.mxu0 %v365
        %513 = vmatprep.subr.mxu0 0.0
        %514 = vmatpush1.msra.mxu0 %v364
        %515 = vmatprep.subr.mxu0 0.0
        %516 = vmatpush1.msra.mxu0 %v363
        %517 = vmatprep.subr.mxu0 0.0
        %518 = vmatpush1.msra.mxu0 %v362
        %519 = vmatprep.subr.mxu0 0.0
        %520 = vmatpush2.msra.mxu0 0.0
        %521 = vmatprep.subr.mxu0 0.0
        %522 = vmatpush2.msra.mxu0 0.0
        %523 = vmatprep.subr.mxu0 0.0
        %524 = vmatpush2.msra.mxu0 0.0
        %525 = vmatprep.subr.mxu0 0.0
        %526 = vmatpush2.msra.mxu0 0.0
        %527 = vmatprep.subr.mxu0 0.0
        %528 = vmatpush2.msra.mxu0 0.0
        %529 = vmatprep.subr.mxu0 0.0
        %530 = vmatpush2.msra.mxu0 0.0
        %531 = vmatprep.subr.mxu0 0.0
        %532 = vmatpush2.msra.mxu0 0.0
        %533 = vmatprep.subr.mxu0 0.0
        %534 = vmatpush2.msra.mxu0 0.0
        %535 = vmatprep.subr.mxu0 0.0
        %536 = vmatpush2.msra.mxu0 0.0
        %537 = vmatprep.subr.mxu0 0.0
        %538 = vmatpush2.msra.mxu0 0.0
        %539 = vmatprep.subr.mxu0 0.0
        %540 = vmatpush2.msra.mxu0 0.0
        %541 = vmatprep.subr.mxu0 0.0
        %542 = vmatpush2.msra.mxu0 0.0
        %543 = vmatprep.subr.mxu0 0.0
        %544 = vmatpush2.msra.mxu0 0.0
        %545 = vmatprep.subr.mxu0 0.0
        %546 = vmatpush2.msra.mxu0 0.0
        %547 = vmatprep.subr.mxu0 0.0
        %548 = vmatpush2.msra.mxu0 0.0
        %549 = vmatprep.subr.mxu0 0.0
        %550 = vmatpush2.msra.mxu0 0.0
        %551 = vmatprep.mubr.f32.mxu0 0.0
        %552 = vmatmul.mubr.f32.gmra.mxu0 %v474
        %v553 = vpop.f32.mrf.mxu0
        %v554 = vadd.f32 0.0, %v553
        %v555 = vpop.f32.mrf.mxu0
        %556 = vdwg.mxu0
        %v557 = vadd.f32 %v486, %v554
        %558 = vst [vmem:[#allocation4] sm:$0xff] %v557
        %559 = vst [vmem:[#allocation2] sm:$0xff] %v465
        // Predicated region
        $region53: #{tpu_custom_call.1} parent=35 // pred_check
          %p560 = pneg %p338
        $region54: #{tpu_custom_call.1} parent=35 // pred_check_branch
          %562 = sbr.rel (%p560) target = $region56
        $region55: #{tpu_custom_call.1} parent=35 // pred_region
          %v563 = vld [vmem:[#allocation3] sm:$0xff]
          %v564 = vrcp.pop %v563
          %v565 = vld [vmem:[#allocation4] sm:$0xff]
          %567 = vset.pattern.permute.xlu0 0
          %568 = vperm.xlu0 %567, %v564
          %v569 = vpop.permute.xlu0 %568
          %v571 = vmul.f32 %v565, %v569
          %572 = vst [vmem:[%s332] sm:$0xff] %v571
        $region56: #{tpu_custom_call.1} parent=35 // pred_fallthru
          _
        %s573 = sand.u32 %s163, 1
        %s574 = scalar_lea.sflag [#allocation7], %s573
        %s575 = sand.u32 %s163, 1
        %s576 = smul.addr %s575, 8
        %s577 = scalar_lea.vmem [#allocation11], %s576
        // Predicated region
        $region57: #{tpu_custom_call.1} parent=35 // pred_check
          %p578 = pneg %p173
        $region58: #{tpu_custom_call.1} parent=35 // pred_check_branch
          %580 = sbr.rel (%p578) target = $region60
        $region59: #{tpu_custom_call.1} parent=35 // pred_region
          %s582 = ssub.s32 128, 128
          %583 = vsyncadd %s574, %s582
          %s584 = sadd.s32 %s30, %s29
          %s585 = smul.addr %s584, 128
          %s586 = scalar_lea.hbm %s4, %s585
          %s588 = sshll.u32 %s577, 4
          %s589 = int_to_ptr.vmem [resolvable:$true] %s588
          %591 = dma.vmem_to_hbm [thread:$0]  %s589, 128, %s586, %s574
        $region60: #{tpu_custom_call.1} parent=35 // pred_fallthru
          _
      $region36: #{tpu_custom_call.1} parent=5 // pred_fallthru
        _
      %p592 = scmp.le.s32.totalorder 2, %s19
      // Predicated region
      $region61: #{tpu_custom_call.1} parent=5 // pred_check
        %p593 = pneg %p592
      $region62: #{tpu_custom_call.1} parent=5 // pred_check_branch
        %595 = sbr.rel (%p593) target = $region64
      $region63: #{tpu_custom_call.1} parent=5 // pred_region
        %s596 = ssub.s32 %s19, 2
        // Predicated region
        $region65: #{tpu_custom_call.1} parent=63 // pred_check
          %p597 = pneg %p179
        $region66: #{tpu_custom_call.1} parent=63 // pred_check_branch
          %599 = sbr.rel (%p597) target = $region68
        $region67: #{tpu_custom_call.1} parent=63 // pred_region
          %s600 = sand.u32 %s164, 1
          %s601 = scalar_lea.sflag [#allocation7], %s600
          %s602 = sand.u32 %s164, 1
          %s603 = smul.addr %s602, 8
          %s604 = scalar_lea.vmem [#allocation11], %s603
          %605 = dma.done %s601, 128
        $region68: #{tpu_custom_call.1} parent=63 // pred_fallthru
          _
      $region64: #{tpu_custom_call.1} parent=5 // pred_fallthru
        _
    $region6: #{tpu_custom_call.1} parent=1 // loop_footer
      %s23 = sadd.s32 1, %s19
    $region7: #{tpu_custom_call.1} parent=1 // loop_footer_branch
      %18 = sbr.rel target = $region3
    $region8: #{tpu_custom_call.1} parent=1 // loop_exit
      _
    %606 = vsyncpa [#allocation6], 1
    %s607 = scalar_lea.sflag [#allocation6], 1
    %608 = vsyncpa %s607, 1
    %609 = vsyncpa [#allocation9], 1
    %s610 = scalar_lea.sflag [#allocation9], 1
    %611 = vsyncpa %s610, 1
    %612 = vsyncpa [#allocation7], 1
    %s613 = scalar_lea.sflag [#allocation7], 1
    %614 = vsyncpa %s613, 1

</llo_original>
